<compile_context>
chip_gen: v7x
topology: tpu7x:2x2x1
jax: 0.10.0
libtpu: 0.0.40
codegen_flags: <defaults>
</compile_context>

<pallas_src>
import functools

import jax
import jax.numpy as jnp
from jax.experimental import pallas as pl
from jax.experimental.pallas import tpu as pltpu


# ---------------------------------------------------------------------------
# helpers
# ---------------------------------------------------------------------------
def _round_up(x, m):
    return (x + m - 1) // m * m


def _vmem_limit(est_bytes):
    # explicit scoped-VMEM limit with headroom; stays well under v7x's 64 MiB/TC.
    return int(min(48 * 2**20, max(32 * 2**20, 2 * est_bytes)))


def _pick_rows(n_rows, per_row_bytes, *, budget=12 * 2**20, max_rows=1024):
    # biggest row tile that fits the VMEM budget (double-buffered in+out),
    # multiple of 8 sublanes, never below 8, never larger than needed.
    tr = int(min(max_rows, max(8, budget // max(per_row_bytes, 1))))
    tr = max(8, (tr // 8) * 8)
    tr = min(tr, _round_up(n_rows, 8))
    return tr


# ---------------------------------------------------------------------------
# Kernel 1: WithBias LayerNorm over channels (lane-packed rows)
# ---------------------------------------------------------------------------
def _ln_wb_kernel(x_ref, w_ref, b_ref, m_ref, o_ref, *, eps):
    x = x_ref[...].astype(jnp.float32)                                  # (tr, L), L = pack*C
    m = m_ref[...]                                                      # (L, L) block-diag 1/C
    mu = jnp.dot(x, m, preferred_element_type=jnp.float32)              # per-segment mean
    xc = x - mu
    var = jnp.dot(xc * xc, m, preferred_element_type=jnp.float32)       # per-segment variance
    y = xc * jax.lax.rsqrt(var + eps) * w_ref[...] + b_ref[...]
    o_ref[...] = y.astype(o_ref.dtype)


def layernorm_withbias_rows(x_rows, weight, bias, *, eps=1e-5):
    """WithBias_LayerNorm over the last dim of (R, C) rows."""
    R, C = x_rows.shape
    pack = 128 // C if (C <= 128 and 128 % C == 0) else 1   # rows packed per 128-lane slab
    L = pack * C
    bpe = x_rows.dtype.itemsize

    Rp = _round_up(R, pack)
    xp = jnp.pad(x_rows, ((0, Rp - R), (0, 0))) if Rp != R else x_rows
    xp = xp.reshape(Rp // pack, L)
    n_rows = Rp // pack

    tr = _pick_rows(n_rows, 2 * 2 * L * bpe)
    Rt = _round_up(n_rows, tr)
    if Rt != n_rows:
        xp = jnp.pad(xp, ((0, Rt - n_rows), (0, 0)))

    w_t = jnp.tile(weight.astype(x_rows.dtype), pack).reshape(1, L)
    b_t = jnp.tile(bias.astype(x_rows.dtype), pack).reshape(1, L)
    m = jnp.kron(jnp.eye(pack, dtype=jnp.float32),
                 jnp.full((C, C), 1.0 / C, dtype=jnp.float32))

    est = 2 * 2 * tr * L * bpe + L * L * 4 + 2 * L * bpe
    out = pl.pallas_call(
        functools.partial(_ln_wb_kernel, eps=eps),
        out_shape=jax.ShapeDtypeStruct((Rt, L), x_rows.dtype),
        grid_spec=pltpu.PrefetchScalarGridSpec(
            num_scalar_prefetch=0,
            grid=(Rt // tr,),
            in_specs=[
                pl.BlockSpec((tr, L), lambda i: (i, 0)),
                pl.BlockSpec((1, L), lambda i: (0, 0)),
                pl.BlockSpec((1, L), lambda i: (0, 0)),
                pl.BlockSpec((L, L), lambda i: (0, 0)),
            ],
            out_specs=pl.BlockSpec((tr, L), lambda i: (i, 0)),
        ),
        compiler_params=pltpu.CompilerParams(
            dimension_semantics=("parallel",),
            vmem_limit_bytes=_vmem_limit(est)),
    )(xp, w_t, b_t, m)
    return out[:n_rows].reshape(Rp, C)[:R]


# ---------------------------------------------------------------------------
# Kernel 2: 1x1 convolution (rows x channels matmul) with fused epilogues
# ---------------------------------------------------------------------------
def _pw_kernel(x_ref, w_ref, b_ref, o_ref, *, preact, act):
    x = x_ref[...].astype(jnp.float32)                                  # (tr, Cin)
    if preact == "relu6":
        x = jnp.clip(x, 0.0, 6.0)
    y = jnp.dot(x, w_ref[...].astype(jnp.float32),
                preferred_element_type=jnp.float32)                     # (tr, Cout)
    y = y + b_ref[...].astype(jnp.float32)
    if act == "relu6":
        y = jnp.clip(y, 0.0, 6.0)
    elif act == "exp":
        y = jnp.exp(y)
    o_ref[...] = y.astype(o_ref.dtype)


def pointwise_conv(x_rows, w_io, bias=None, *, preact=None, act=None):
    """y = act(preact(x) @ w_io + bias) for x (R, Cin), w_io (Cin, Cout)."""
    R, Cin = x_rows.shape
    Cout = w_io.shape[1]
    bpe = x_rows.dtype.itemsize

    tr = _pick_rows(R, 2 * (Cin + Cout) * bpe)
    Rt = _round_up(R, tr)
    xp = jnp.pad(x_rows, ((0, Rt - R), (0, 0))) if Rt != R else x_rows
    b2 = (bias if bias is not None else jnp.zeros((Cout,), x_rows.dtype)).reshape(1, Cout)

    est = 2 * tr * (Cin + Cout) * bpe + (Cin + 1) * Cout * bpe
    out = pl.pallas_call(
        functools.partial(_pw_kernel, preact=preact, act=act),
        out_shape=jax.ShapeDtypeStruct((Rt, Cout), x_rows.dtype),
        grid_spec=pltpu.PrefetchScalarGridSpec(
            num_scalar_prefetch=0,
            grid=(Rt // tr,),
            in_specs=[
                pl.BlockSpec((tr, Cin), lambda i: (i, 0)),
                pl.BlockSpec((Cin, Cout), lambda i: (0, 0)),
                pl.BlockSpec((1, Cout), lambda i: (0, 0)),
            ],
            out_specs=pl.BlockSpec((tr, Cout), lambda i: (i, 0)),
        ),
        compiler_params=pltpu.CompilerParams(
            dimension_semantics=("parallel",),
            vmem_limit_bytes=_vmem_limit(est)),
    )(xp, w_io, b2)
    return out[:R]


# ---------------------------------------------------------------------------
# Kernel 3: channel-attention core of AttentionBase, per (batch, head)
# ---------------------------------------------------------------------------
def _chan_attn_kernel(q_ref, k_ref, v_ref, scale_ref, o_ref):
    i = pl.program_id(0)
    q = q_ref[0].astype(jnp.float32)                                    # (c, hw)
    k = k_ref[0].astype(jnp.float32)
    v = v_ref[0].astype(jnp.float32)
    qn = q / jnp.maximum(jnp.sqrt(jnp.sum(q * q, axis=-1, keepdims=True)), 1e-12)
    kn = k / jnp.maximum(jnp.sqrt(jnp.sum(k * k, axis=-1, keepdims=True)), 1e-12)
    attn = jax.lax.dot_general(qn, kn, (((1,), (1,)), ((), ())),
                               preferred_element_type=jnp.float32)      # (c, c)
    attn = attn * scale_ref[i]
    attn = attn - jnp.max(attn, axis=-1, keepdims=True)
    p = jnp.exp(attn)
    p = p / jnp.sum(p, axis=-1, keepdims=True)
    out = jnp.dot(p, v, preferred_element_type=jnp.float32)             # (c, hw)
    o_ref[0] = out.astype(o_ref.dtype)


def channel_attention(q3, k3, v3, scale_bh):
    """q3/k3/v3: (B*heads, c, hw); scale_bh: (B*heads,) per-(batch,head) scale."""
    BH, c, hw = q3.shape
    est = 2 * 4 * c * hw * q3.dtype.itemsize
    return pl.pallas_call(
        _chan_attn_kernel,
        out_shape=jax.ShapeDtypeStruct((BH, c, hw), q3.dtype),
        grid_spec=pltpu.PrefetchScalarGridSpec(
            num_scalar_prefetch=0,
            grid=(BH,),
            in_specs=[
                pl.BlockSpec((1, c, hw), lambda i: (i, 0, 0)),
                pl.BlockSpec((1, c, hw), lambda i: (i, 0, 0)),
                pl.BlockSpec((1, c, hw), lambda i: (i, 0, 0)),
                pl.BlockSpec(memory_space=pltpu.MemorySpace.SMEM),
            ],
            out_specs=pl.BlockSpec((1, c, hw), lambda i: (i, 0, 0)),
        ),
        compiler_params=pltpu.CompilerParams(
            dimension_semantics=("parallel",),
            vmem_limit_bytes=_vmem_limit(est)),
    )(q3, k3, v3, scale_bh)


# ---------------------------------------------------------------------------
# plain-JAX glue (spatial convolutions, rearranges)
# ---------------------------------------------------------------------------
def conv2d_nhwc(x, w_hwio, *, padding, groups=1):
    return jax.lax.conv_general_dilated(
        x, w_hwio, window_strides=(1, 1), padding=padding,
        dimension_numbers=("NHWC", "HWIO", "NHWC"),
        feature_group_count=groups)


def attention_base(x_nhwc, p, heads):
    B, H, W, C = x_nhwc.shape
    R, cc = B * H * W, C // heads
    qkv = pointwise_conv(x_nhwc.reshape(R, C), p["qkv1_w"]).reshape(B, H, W, 3 * C)
    qkv = conv2d_nhwc(qkv, p["qkv2_w"], padding="SAME")
    q, k, v = jnp.split(qkv, 3, axis=-1)

    def to_heads(t):                       # (B,H,W,C) -> (B*heads, C//heads, H*W)
        t = t.reshape(B, H * W, heads, cc)
        return jnp.transpose(t, (0, 2, 3, 1)).reshape(B * heads, cc, H * W)

    out = channel_attention(to_heads(q), to_heads(k), to_heads(v),
                            jnp.tile(p["scale"], B))
    out = out.reshape(B, heads, cc, H * W)
    out = jnp.transpose(out, (0, 3, 1, 2)).reshape(B, H, W, C)
    return pointwise_conv(out.reshape(R, C), p["proj_w"]).reshape(B, H, W, C)


def mlp_block(x_nhwc, p):
    B, H, W, C = x_nhwc.shape
    R = B * H * W
    h2 = p["in_w"].shape[1]
    hidden = h2 // 2
    y = pointwise_conv(x_nhwc.reshape(R, C), p["in_w"]).reshape(B, H, W, h2)
    y = conv2d_nhwc(y, p["dw_w"], padding="SAME", groups=hidden)
    a, b = y[..., :hidden], y[..., hidden:]
    g = jax.nn.gelu(a, approximate=False) * b       # exact erf GELU (matches torch F.gelu)
    return pointwise_conv(g.reshape(R, hidden), p["out_w"]).reshape(B, H, W, C)


def base_feature_extraction(x_nhwc, p):
    B, H, W, C = x_nhwc.shape
    R = B * H * W
    y = layernorm_withbias_rows(x_nhwc.reshape(R, C), p["norm1_w"], p["norm1_b"])
    x_nhwc = x_nhwc + attention_base(y.reshape(B, H, W, C), p["attn"], p["num_heads"])
    y = layernorm_withbias_rows(x_nhwc.reshape(R, C), p["norm2_w"], p["norm2_b"])
    return x_nhwc + mlp_block(y.reshape(B, H, W, C), p["mlp"])


def inverted_residual(x_nhwc, p, *, final_act=None):
    B, H, W, Cin = x_nhwc.shape
    R = B * H * W
    hid, oup = p["pw1_w"].shape[1], p["pw2_w"].shape[1]
    y = pointwise_conv(x_nhwc.reshape(R, Cin), p["pw1_w"], act="relu6").reshape(B, H, W, hid)
    y = jnp.pad(y, ((0, 0), (1, 1), (1, 1), (0, 0)), mode="reflect")     # ReflectionPad2d(1)
    y = conv2d_nhwc(y, p["dw_w"], padding="VALID", groups=hid)           # depthwise 3x3
    # ReLU6 after the depthwise conv is fused as a pre-activation of the last 1x1 conv.
    y = pointwise_conv(y.reshape(R, hid), p["pw2_w"], preact="relu6", act=final_act)
    return y.reshape(B, H, W, oup)


def detail_node(z1, z2, p):
    B, H, W, C = z1.shape
    R = B * H * W
    z = jnp.concatenate([z1, z2], axis=-1)
    z = pointwise_conv(z.reshape(R, 2 * C), p["shuffle_w"], p["shuffle_b"]).reshape(B, H, W, 2 * C)
    z1n, z2n = z[..., :C], z[..., C:]
    z2o = z2n + inverted_residual(z1n, p["theta_phi"])
    # z1 = z1 * exp(theta_rho(z2)) + theta_eta(z2); exp() fused into theta_rho's last 1x1 conv
    z1o = (z1n * inverted_residual(z2o, p["theta_rho"], final_act="exp")
           + inverted_residual(z2o, p["theta_eta"]))
    return z1o, z2o


def detail_feature_extraction(x_nhwc, node_params):
    C = x_nhwc.shape[-1]
    z1, z2 = x_nhwc[..., : C // 2], x_nhwc[..., C // 2:]
    for p in node_params:
        z1, z2 = detail_node(z1, z2, p)
    return jnp.concatenate([z1, z2], axis=-1)


def vmamba_encoder(x_nchw, params):
    x = jnp.transpose(x_nchw, (0, 2, 3, 1))                              # NCHW -> NHWC
    inp = conv2d_nhwc(x, params["patch_embed_w"], padding="SAME")        # OverlapPatchEmbed
    # TODO(synk): vmamba_for_fuse.VSSM (the SS2D selective-scan backbone) has no source in
    # the provided spec; it is treated as an identity passthrough here.
    out_enc = inp
    base = base_feature_extraction(out_enc, params["base"])
    detail = detail_feature_extraction(out_enc, params["detail"])
    to_nchw = lambda t: jnp.transpose(t, (0, 3, 1, 2))
    return to_nchw(base), to_nchw(detail), to_nchw(out_enc)


# ---------------------------------------------------------------------------
# deterministic parameter init
# ---------------------------------------------------------------------------
def init_params(key, *, dim=64, heads=8):
    ks = iter(jax.random.split(key, 64))
    gain = 0.5

    def mat(cin, cout):               # 1x1 conv weight stored as (Cin, Cout)
        return gain * jax.random.normal(next(ks), (cin, cout), jnp.float32) / jnp.sqrt(cin)

    def conv_hwio(kh, kw, cin_pg, cout):
        return gain * jax.random.normal(next(ks), (kh, kw, cin_pg, cout),
                                        jnp.float32) / jnp.sqrt(kh * kw * cin_pg)

    def irb(inp, oup, expand):
        hid = int(inp * expand)
        return {"pw1_w": mat(inp, hid),
                "dw_w": conv_hwio(3, 3, 1, hid),
                "pw2_w": mat(hid, oup)}

    hidden = int(dim * 1.0)           # Mlp(ffn_expansion_factor=1.0) in BaseFeatureExtraction
    return {
        "patch_embed_w": conv_hwio(3, 3, 1, dim),
        "base": {
            "num_heads": heads,
            "norm1_w": jnp.ones((dim,), jnp.float32),
            "norm1_b": jnp.zeros((dim,), jnp.float32),
            "norm2_w": jnp.ones((dim,), jnp.float32),
            "norm2_b": jnp.zeros((dim,), jnp.float32),
            "attn": {"scale": jnp.ones((heads,), jnp.float32),
                     "qkv1_w": mat(dim, 3 * dim),
                     "qkv2_w": conv_hwio(3, 3, 3 * dim, 3 * dim),
                     "proj_w": mat(dim, dim)},
            "mlp": {"in_w": mat(dim, 2 * hidden),
                    "dw_w": conv_hwio(3, 3, 2, 2 * hidden),   # groups = hidden
                    "out_w": mat(hidden, dim)},
        },
        "detail": [
            {"shuffle_w": mat(64, 64),
             "shuffle_b": 0.01 * jax.random.normal(next(ks), (64,), jnp.float32),
             "theta_phi": irb(32, 32, 2),
             "theta_rho": irb(32, 32, 2),
             "theta_eta": irb(32, 32, 2)}
            for _ in range(3)
        ],
    }


if __name__ == "__main__":
    # ---- kernel-level sanity checks vs pure-JAX references -----------------
    c0, c1, c2, c3, c4, c5 = jax.random.split(jax.random.PRNGKey(7), 6)
    xr = jax.random.normal(c0, (300, 64), jnp.float32)       # odd R exercises padding paths
    wln = 1.0 + 0.1 * jax.random.normal(c1, (64,), jnp.float32)
    bln = 0.1 * jax.random.normal(c2, (64,), jnp.float32)
    y_k = layernorm_withbias_rows(xr, wln, bln)
    mu = jnp.mean(xr, -1, keepdims=True)
    var = jnp.mean((xr - mu) ** 2, -1, keepdims=True)
    y_r = (xr - mu) / jnp.sqrt(var + 1e-5) * wln + bln
    assert jnp.allclose(y_k, y_r, atol=2e-2, rtol=2e-2), "LayerNorm kernel mismatch"

    wpw = jax.random.normal(c3, (64, 96), jnp.float32) / 8.0
    bpw = 0.1 * jax.random.normal(c4, (96,), jnp.float32)
    z_k = pointwise_conv(xr, wpw, bpw, act="relu6")
    z_r = jnp.clip(xr @ wpw + bpw, 0.0, 6.0)
    assert jnp.allclose(z_k, z_r, atol=2e-2, rtol=2e-2), "pointwise-conv kernel mismatch"

    qkv = jax.random.normal(c5, (3, 16, 8, 256), jnp.float32)
    sc = jnp.linspace(0.5, 1.5, 16, dtype=jnp.float32)
    a_k = channel_attention(qkv[0], qkv[1], qkv[2], sc)
    qn = qkv[0] / jnp.maximum(jnp.linalg.norm(qkv[0], axis=-1, keepdims=True), 1e-12)
    kn = qkv[1] / jnp.maximum(jnp.linalg.norm(qkv[1], axis=-1, keepdims=True), 1e-12)
    at = jax.nn.softmax(jnp.einsum("bcd,bed->bce", qn, kn) * sc[:, None, None], axis=-1)
    a_r = jnp.einsum("bce,bed->bcd", at, qkv[2])
    assert jnp.allclose(a_k, a_r, atol=2e-2, rtol=2e-2), "channel-attention kernel mismatch"

    # ---- full VMamba_Encoder forward ---------------------------------------
    B, H, W = 2, 16, 16
    x = jax.random.normal(jax.random.PRNGKey(0), (B, 1, H, W), dtype=jnp.float32)
    params = init_params(jax.random.PRNGKey(0))

    fwd = jax.jit(lambda t: vmamba_encoder(t, params))
    base, detail, enc = jax.block_until_ready(fwd(x))

    assert base.shape == (B, 64, H, W)
    assert detail.shape == (B, 64, H, W)
    assert enc.shape == (B, 64, H, W)
    for t in (base, detail, enc):
        assert bool(jnp.all(jnp.isfinite(t)))

    print("KERNEL_OK")
</pallas_src>

<mosaic_0001>
module attributes {stable_mosaic.version = 11 : i64} {
  func.func @_ln_wb_kernel(%arg0: i32, %arg1: memref<152x128xf32, #tpu.memory_space<vmem>>, %arg2: memref<1x128xf32, #tpu.memory_space<vmem>>, %arg3: memref<1x128xf32, #tpu.memory_space<vmem>>, %arg4: memref<128x128xf32, #tpu.memory_space<vmem>>, %arg5: memref<152x128xf32, #tpu.memory_space<vmem>>) attributes {dimension_semantics = [#tpu.dimension_semantics<parallel>], iteration_bounds = array<i64: 1>, scalar_prefetch = 0 : i64, scratch_operands = 0 : i64, tpu.core_type = #tpu.core_type<tc>, window_params = [{transform_indices = @transform_0, window_bounds = array<i64: 152, 128>}, {pipeline_mode = #tpu.pipeline_mode<synchronous>, transform_indices = @transform_1, window_bounds = array<i64: 1, 128>}, {pipeline_mode = #tpu.pipeline_mode<synchronous>, transform_indices = @transform_2, window_bounds = array<i64: 1, 128>}, {pipeline_mode = #tpu.pipeline_mode<synchronous>, transform_indices = @transform_3, window_bounds = array<i64: 128, 128>}, {transform_indices = @transform_4, window_bounds = array<i64: 152, 128>}]} {
    %c0 = arith.constant 0 : index
    %c0_0 = arith.constant 0 : index
    %0 = vector.load %arg1[%c0, %c0_0] : memref<152x128xf32, #tpu.memory_space<vmem>>, vector<152x128xf32>
    %c0_1 = arith.constant 0 : index
    %c0_2 = arith.constant 0 : index
    %1 = vector.load %arg4[%c0_1, %c0_2] : memref<128x128xf32, #tpu.memory_space<vmem>>, vector<128x128xf32>
    %cst = arith.constant dense<0.000000e+00> : vector<152x128xf32>
    %2 = tpu.matmul %0, %1, %cst {dimension_numbers = #tpu.dot_dimension_numbers<[1], [0], [0], [1], [0, 0, 1, 1], [], []>} : vector<152x128xf32>, vector<128x128xf32>, vector<152x128xf32> -> vector<152x128xf32>
    %3 = arith.subf %0, %2 : vector<152x128xf32>
    %4 = arith.mulf %3, %3 : vector<152x128xf32>
    %cst_3 = arith.constant dense<0.000000e+00> : vector<152x128xf32>
    %5 = tpu.matmul %4, %1, %cst_3 {dimension_numbers = #tpu.dot_dimension_numbers<[1], [0], [0], [1], [0, 0, 1, 1], [], []>} : vector<152x128xf32>, vector<128x128xf32>, vector<152x128xf32> -> vector<152x128xf32>
    %cst_4 = arith.constant 9.99999974E-6 : f32
    %6 = vector.broadcast %cst_4 : f32 to vector<152x128xf32>
    %7 = arith.addf %5, %6 : vector<152x128xf32>
    %8 = math.rsqrt %7 : vector<152x128xf32>
    %9 = arith.mulf %3, %8 : vector<152x128xf32>
    %c0_5 = arith.constant 0 : index
    %c0_6 = arith.constant 0 : index
    %10 = vector.load %arg2[%c0_5, %c0_6] : memref<1x128xf32, #tpu.memory_space<vmem>>, vector<1x128xf32>
    %11 = vector.broadcast %10 : vector<1x128xf32> to vector<152x128xf32>
    %12 = arith.mulf %9, %11 : vector<152x128xf32>
    %c0_7 = arith.constant 0 : index
    %c0_8 = arith.constant 0 : index
    %13 = vector.load %arg3[%c0_7, %c0_8] : memref<1x128xf32, #tpu.memory_space<vmem>>, vector<1x128xf32>
    %14 = vector.broadcast %13 : vector<1x128xf32> to vector<152x128xf32>
    %15 = arith.addf %12, %14 : vector<152x128xf32>
    %c0_9 = arith.constant 0 : index
    %c0_10 = arith.constant 0 : index
    %16 = vector.load %arg5[%c0_9, %c0_10] : memref<152x128xf32, #tpu.memory_space<vmem>>, vector<152x128xf32>
    tpu.vector_store %arg5[%c0_9, %c0_10], %15 {strides = array<i32>} : memref<152x128xf32, #tpu.memory_space<vmem>>, vector<152x128xf32>,
    return
  }
  func.func @transform_0(%arg0: i32) -> (i32, i32) {
    %c0_i32 = arith.constant 0 : i32
    %c0_i32_0 = arith.constant 0 : i32
    return %arg0, %c0_i32 : i32, i32
  }
  func.func @transform_1(%arg0: i32) -> (i32, i32) {
    %c0_i32 = arith.constant 0 : i32
    %c0_i32_0 = arith.constant 0 : i32
    %c0_i32_1 = arith.constant 0 : i32
    return %c0_i32, %c0_i32_0 : i32, i32
  }
  func.func @transform_2(%arg0: i32) -> (i32, i32) {
    %c0_i32 = arith.constant 0 : i32
    %c0_i32_0 = arith.constant 0 : i32
    %c0_i32_1 = arith.constant 0 : i32
    return %c0_i32, %c0_i32_0 : i32, i32
  }
  func.func @transform_3(%arg0: i32) -> (i32, i32) {
    %c0_i32 = arith.constant 0 : i32
    %c0_i32_0 = arith.constant 0 : i32
    %c0_i32_1 = arith.constant 0 : i32
    return %c0_i32, %c0_i32_0 : i32, i32
  }
  func.func @transform_4(%arg0: i32) -> (i32, i32) {
    %c0_i32 = arith.constant 0 : i32
    %c0_i32_0 = arith.constant 0 : i32
    return %arg0, %c0_i32 : i32, i32
  }
}

</mosaic_0001>

<llo_original>
// kernel: tpu_custom_call.1
$region0: #{tpu_custom_call.1}
  #allocation0 [shape = 'u32[]', space=smem, size = 0x4, offset = 0x4, fixed_abs, tag = 'smem constant byte address 0x4 - core index']
  #allocation1 [shape = 'u32[144,128]{1,0:T(1,128)}', space=vmem, size = 0x12000, scoped, tag = 'internal scratch']
  %s0 = inlined_call_operand.hbm [shape: f32[152,128], index: 0, kind: input, shape index: {}]
  %s1 = inlined_call_operand.vmem [shape: f32[1,128], index: 1, kind: input, shape index: {}]
  %s2 = inlined_call_operand.vmem [shape: f32[1,128], index: 2, kind: input, shape index: {}]
  %s3 = inlined_call_operand.hbm [shape: f32[128,128], index: 3, kind: input, shape index: {}]
  %s4 = inlined_call_operand.hbm [shape: f32[152,128], index: 4, kind: output, shape index: {}]
  %s5 = sld [smem:[#allocation0]]
  $region34: #{tpu_custom_call.1} parent=0
    _
  %s7 = ssub.s32 1, %s5
  %s8 = scalar_select 0, %s7, %s5
  $region1: #{tpu_custom_call.1} parent=0
    #allocation2 [shape = 'u8[77824]{0}', space=vmem, size = 0x13000, scoped, tag = 'input window, operand 0, single buffered']
    #allocation3 [shape = 's32[1]{0}', space=sflag, size = 0x4, scoped, tag = 'scoped memory for tpu_custom_call.1']
    #allocation4 [shape = 's32[1]{0}', space=sflag, size = 0x4, scoped, tag = 'scoped memory for tpu_custom_call.1']
    #allocation5 [shape = 'u8[65536]{0}', space=vmem, size = 0x10000, scoped, tag = 'input window, operand 3, single buffered']
    #allocation6 [shape = 's32[1]{0}', space=sflag, size = 0x4, scoped, tag = 'scoped memory for tpu_custom_call.1']
    #allocation7 [shape = 'u8[77824]{0}', space=vmem, size = 0x13000, scoped, tag = 'output window, operand 0, single buffered']
    %9 = vsyncpa [#allocation3], 0
    %10 = vsyncpa [#allocation6], 0
    %11 = vsyncpa [#allocation4], 0
    // Predicated region
    $region2: #{tpu_custom_call.1} parent=1 // pred_check
      _
    $region3: #{tpu_custom_call.1} parent=1 // pred_check_branch
      %13 = sbr.rel (0) target = $region5
    $region4: #{tpu_custom_call.1} parent=1 // pred_region
      %s15 = ssub.s32 2432, 2432
      %16 = vsyncadd [#allocation3], %s15
      %s17 = sshll.u32 [#allocation2], 4
      %s18 = int_to_ptr.vmem [resolvable:$true] %s17
      %23 = dma.hbm_to_vmem [thread:$0]  %s0, 2432, %s18, [#allocation3], 128, 128, 8
    $region5: #{tpu_custom_call.1} parent=1 // pred_fallthru
      _
    // Predicated region
    $region6: #{tpu_custom_call.1} parent=1 // pred_check
      _
    $region7: #{tpu_custom_call.1} parent=1 // pred_check_branch
      %25 = sbr.rel (0) target = $region9
    $region8: #{tpu_custom_call.1} parent=1 // pred_region
      _
    $region9: #{tpu_custom_call.1} parent=1 // pred_fallthru
      _
    // Predicated region
    $region10: #{tpu_custom_call.1} parent=1 // pred_check
      _
    $region11: #{tpu_custom_call.1} parent=1 // pred_check_branch
      %27 = sbr.rel (0) target = $region13
    $region12: #{tpu_custom_call.1} parent=1 // pred_region
      _
    $region13: #{tpu_custom_call.1} parent=1 // pred_fallthru
      _
    // Predicated region
    $region14: #{tpu_custom_call.1} parent=1 // pred_check
      _
    $region15: #{tpu_custom_call.1} parent=1 // pred_check_branch
      %29 = sbr.rel (0) target = $region17
    $region16: #{tpu_custom_call.1} parent=1 // pred_region
      %s31 = ssub.s32 2048, 2048
      %32 = vsyncadd [#allocation6], %s31
      %s33 = sshll.u32 [#allocation5], 4
      %s34 = int_to_ptr.vmem [resolvable:$true] %s33
      %39 = dma.hbm_to_vmem [thread:$0]  %s3, 2048, %s34, [#allocation6], 128, 128, 8
    $region17: #{tpu_custom_call.1} parent=1 // pred_fallthru
      _
    // Predicated region
    $region18: #{tpu_custom_call.1} parent=1 // pred_check
      _
    $region19: #{tpu_custom_call.1} parent=1 // pred_check_branch
      %41 = sbr.rel (0) target = $region21
    $region20: #{tpu_custom_call.1} parent=1 // pred_region
      %42 = dma.done [#allocation3], 2432
    $region21: #{tpu_custom_call.1} parent=1 // pred_fallthru
      _
    // Predicated region
    $region22: #{tpu_custom_call.1} parent=1 // pred_check
      _
    $region23: #{tpu_custom_call.1} parent=1 // pred_check_branch
      %44 = sbr.rel (0) target = $region25
    $region24: #{tpu_custom_call.1} parent=1 // pred_region
      %45 = dma.done [#allocation6], 2048
    $region25: #{tpu_custom_call.1} parent=1 // pred_fallthru
      _
    %v46 = vld [vmem:[#allocation2] sm:$0xff]
    %v47 = vld [vmem:[#allocation2 + $0x8] sm:$0xff]
    %v48 = vld [vmem:[#allocation2 + $0x10] sm:$0xff]
    %v49 = vld [vmem:[#allocation2 + $0x18] sm:$0xff]
    %v50 = vld [vmem:[#allocation2 + $0x20] sm:$0xff]
    %v51 = vld [vmem:[#allocation2 + $0x28] sm:$0xff]
    %v52 = vld [vmem:[#allocation2 + $0x30] sm:$0xff]
    %v53 = vld [vmem:[#allocation2 + $0x38] sm:$0xff]
    %v54 = vld [vmem:[#allocation2 + $0x40] sm:$0xff]
    %v55 = vld [vmem:[#allocation2 + $0x48] sm:$0xff]
    %v56 = vld [vmem:[#allocation2 + $0x50] sm:$0xff]
    %v57 = vld [vmem:[#allocation2 + $0x58] sm:$0xff]
    %v58 = vld [vmem:[#allocation2 + $0x60] sm:$0xff]
    %v59 = vld [vmem:[#allocation2 + $0x68] sm:$0xff]
    %v60 = vld [vmem:[#allocation2 + $0x70] sm:$0xff]
    %v61 = vld [vmem:[#allocation2 + $0x78] sm:$0xff]
    %v62 = vld [vmem:[#allocation2 + $0x80] sm:$0xff]
    %v63 = vld [vmem:[#allocation2 + $0x88] sm:$0xff]
    %v64 = vld [vmem:[#allocation2 + $0x90] sm:$0xff]
    %v65 = vld [vmem:[#allocation5] sm:$0xff]
    %v66 = vld [vmem:[#allocation5 + $0x8] sm:$0xff]
    %v67 = vld [vmem:[#allocation5 + $0x10] sm:$0xff]
    %v68 = vld [vmem:[#allocation5 + $0x18] sm:$0xff]
    %v69 = vld [vmem:[#allocation5 + $0x20] sm:$0xff]
    %v70 = vld [vmem:[#allocation5 + $0x28] sm:$0xff]
    %v71 = vld [vmem:[#allocation5 + $0x30] sm:$0xff]
    %v72 = vld [vmem:[#allocation5 + $0x38] sm:$0xff]
    %v73 = vld [vmem:[#allocation5 + $0x40] sm:$0xff]
    %v74 = vld [vmem:[#allocation5 + $0x48] sm:$0xff]
    %v75 = vld [vmem:[#allocation5 + $0x50] sm:$0xff]
    %v76 = vld [vmem:[#allocation5 + $0x58] sm:$0xff]
    %v77 = vld [vmem:[#allocation5 + $0x60] sm:$0xff]
    %v78 = vld [vmem:[#allocation5 + $0x68] sm:$0xff]
    %v79 = vld [vmem:[#allocation5 + $0x70] sm:$0xff]
    %v80 = vld [vmem:[#allocation5 + $0x78] sm:$0xff]
    %81 = vmatprep.subr.mxu0 0.0
    %82 = vmatpush1.msra.mxu0 %v65
    %83 = vmatprep.subr.mxu0 0.0
    %84 = vmatpush1.msra.mxu0 %v66
    %85 = vmatprep.subr.mxu0 0.0
    %86 = vmatpush1.msra.mxu0 %v67
    %87 = vmatprep.subr.mxu0 0.0
    %88 = vmatpush1.msra.mxu0 %v68
    %89 = vmatprep.subr.mxu0 0.0
    %90 = vmatpush1.msra.mxu0 %v69
    %91 = vmatprep.subr.mxu0 0.0
    %92 = vmatpush1.msra.mxu0 %v70
    %93 = vmatprep.subr.mxu0 0.0
    %94 = vmatpush1.msra.mxu0 %v71
    %95 = vmatprep.subr.mxu0 0.0
    %96 = vmatpush1.msra.mxu0 %v72
    %97 = vmatprep.subr.mxu0 0.0
    %98 = vmatpush1.msra.mxu0 %v73
    %99 = vmatprep.subr.mxu0 0.0
    %100 = vmatpush1.msra.mxu0 %v74
    %101 = vmatprep.subr.mxu0 0.0
    %102 = vmatpush1.msra.mxu0 %v75
    %103 = vmatprep.subr.mxu0 0.0
    %104 = vmatpush1.msra.mxu0 %v76
    %105 = vmatprep.subr.mxu0 0.0
    %106 = vmatpush1.msra.mxu0 %v77
    %107 = vmatprep.subr.mxu0 0.0
    %108 = vmatpush1.msra.mxu0 %v78
    %109 = vmatprep.subr.mxu0 0.0
    %110 = vmatpush1.msra.mxu0 %v79
    %111 = vmatprep.subr.mxu0 0.0
    %112 = vmatpush1.msra.mxu0 %v80
    %113 = vmatprep.subr.mxu0 0.0
    %114 = vmatpush1.msra.mxu0 0.0
    %115 = vmatprep.subr.mxu0 0.0
    %116 = vmatpush1.msra.mxu0 0.0
    %117 = vmatprep.subr.mxu0 0.0
    %118 = vmatpush1.msra.mxu0 0.0
    %119 = vmatprep.subr.mxu0 0.0
    %120 = vmatpush1.msra.mxu0 0.0
    %121 = vmatprep.subr.mxu0 0.0
    %122 = vmatpush1.msra.mxu0 0.0
    %123 = vmatprep.subr.mxu0 0.0
    %124 = vmatpush1.msra.mxu0 0.0
    %125 = vmatprep.subr.mxu0 0.0
    %126 = vmatpush1.msra.mxu0 0.0
    %127 = vmatprep.subr.mxu0 0.0
    %128 = vmatpush1.msra.mxu0 0.0
    %129 = vmatprep.subr.mxu0 0.0
    %130 = vmatpush1.msra.mxu0 0.0
    %131 = vmatprep.subr.mxu0 0.0
    %132 = vmatpush1.msra.mxu0 0.0
    %133 = vmatprep.subr.mxu0 0.0
    %134 = vmatpush1.msra.mxu0 0.0
    %135 = vmatprep.subr.mxu0 0.0
    %136 = vmatpush1.msra.mxu0 0.0
    %137 = vmatprep.subr.mxu0 0.0
    %138 = vmatpush1.msra.mxu0 0.0
    %139 = vmatprep.subr.mxu0 0.0
    %140 = vmatpush1.msra.mxu0 0.0
    %141 = vmatprep.subr.mxu0 0.0
    %142 = vmatpush1.msra.mxu0 0.0
    %143 = vmatprep.subr.mxu0 0.0
    %144 = vmatpush1.msra.mxu0 0.0
    %145 = vmatprep.mubr.f32.mxu0 0.0
    %146 = vmatmul.mubr.f32.gmra.mrb[0].mxu0 %v46
    %v147 = vpop.f32.mrb[0].mxu0
    %v148 = vadd.f32 0.0, %v147
    %v149 = vpop.f32.mrb[0].mxu0
    %150 = vmatprep.mubr.f32.mxu0 0.0
    %151 = vmatmul.mubr.f32.gmra.mrb[0].mxu0 %v47
    %v152 = vpop.f32.mrb[0].mxu0
    %v153 = vadd.f32 0.0, %v152
    %v154 = vpop.f32.mrb[0].mxu0
    %155 = vmatprep.mubr.f32.mxu0 0.0
    %156 = vmatmul.mubr.f32.gmra.mrb[0].mxu0 %v48
    %v157 = vpop.f32.mrb[0].mxu0
    %v158 = vadd.f32 0.0, %v157
    %v159 = vpop.f32.mrb[0].mxu0
    %160 = vmatprep.mubr.f32.mxu0 0.0
    %161 = vmatmul.mubr.f32.gmra.mrb[0].mxu0 %v49
    %v162 = vpop.f32.mrb[0].mxu0
    %v163 = vadd.f32 0.0, %v162
    %v164 = vpop.f32.mrb[0].mxu0
    %165 = vmatprep.mubr.f32.mxu0 0.0
    %166 = vmatmul.mubr.f32.gmra.mrb[0].mxu0 %v50
    %v167 = vpop.f32.mrb[0].mxu0
    %v168 = vadd.f32 0.0, %v167
    %v169 = vpop.f32.mrb[0].mxu0
    %170 = vmatprep.mubr.f32.mxu0 0.0
    %171 = vmatmul.mubr.f32.gmra.mrb[0].mxu0 %v51
    %v172 = vpop.f32.mrb[0].mxu0
    %v173 = vadd.f32 0.0, %v172
    %v174 = vpop.f32.mrb[0].mxu0
    %175 = vmatprep.mubr.f32.mxu0 0.0
    %176 = vmatmul.mubr.f32.gmra.mrb[0].mxu0 %v52
    %v177 = vpop.f32.mrb[0].mxu0
    %v178 = vadd.f32 0.0, %v177
    %v179 = vpop.f32.mrb[0].mxu0
    %180 = vmatprep.mubr.f32.mxu0 0.0
    %181 = vmatmul.mubr.f32.gmra.mrb[0].mxu0 %v53
    %v182 = vpop.f32.mrb[0].mxu0
    %v183 = vadd.f32 0.0, %v182
    %v184 = vpop.f32.mrb[0].mxu0
    %185 = vmatprep.mubr.f32.mxu0 0.0
    %186 = vmatmul.mubr.f32.gmra.mrb[0].mxu0 %v54
    %v187 = vpop.f32.mrb[0].mxu0
    %v188 = vadd.f32 0.0, %v187
    %v189 = vpop.f32.mrb[0].mxu0
    %190 = vmatprep.mubr.f32.mxu0 0.0
    %191 = vmatmul.mubr.f32.gmra.mrb[0].mxu0 %v55
    %v192 = vpop.f32.mrb[0].mxu0
    %v193 = vadd.f32 0.0, %v192
    %v194 = vpop.f32.mrb[0].mxu0
    %195 = vmatprep.mubr.f32.mxu0 0.0
    %196 = vmatmul.mubr.f32.gmra.mrb[0].mxu0 %v56
    %v197 = vpop.f32.mrb[0].mxu0
    %v198 = vadd.f32 0.0, %v197
    %v199 = vpop.f32.mrb[0].mxu0
    %200 = vmatprep.mubr.f32.mxu0 0.0
    %201 = vmatmul.mubr.f32.gmra.mrb[0].mxu0 %v57
    %v202 = vpop.f32.mrb[0].mxu0
    %v203 = vadd.f32 0.0, %v202
    %v204 = vpop.f32.mrb[0].mxu0
    %205 = vmatprep.mubr.f32.mxu0 0.0
    %206 = vmatmul.mubr.f32.gmra.mrb[0].mxu0 %v58
    %v207 = vpop.f32.mrb[0].mxu0
    %v208 = vadd.f32 0.0, %v207
    %v209 = vpop.f32.mrb[0].mxu0
    %210 = vmatprep.mubr.f32.mxu0 0.0
    %211 = vmatmul.mubr.f32.gmra.mrb[0].mxu0 %v59
    %v212 = vpop.f32.mrb[0].mxu0
    %v213 = vadd.f32 0.0, %v212
    %v214 = vpop.f32.mrb[0].mxu0
    %215 = vmatprep.mubr.f32.mxu0 0.0
    %216 = vmatmul.mubr.f32.gmra.mrb[0].mxu0 %v60
    %v217 = vpop.f32.mrb[0].mxu0
    %v218 = vadd.f32 0.0, %v217
    %v219 = vpop.f32.mrb[0].mxu0
    %220 = vmatprep.mubr.f32.mxu0 0.0
    %221 = vmatmul.mubr.f32.gmra.mrb[0].mxu0 %v61
    %v222 = vpop.f32.mrb[0].mxu0
    %v223 = vadd.f32 0.0, %v222
    %v224 = vpop.f32.mrb[0].mxu0
    %225 = vmatprep.mubr.f32.mxu0 0.0
    %226 = vmatmul.mubr.f32.gmra.mrb[0].mxu0 %v62
    %v227 = vpop.f32.mrb[0].mxu0
    %v228 = vadd.f32 0.0, %v227
    %v229 = vpop.f32.mrb[0].mxu0
    %230 = vmatprep.mubr.f32.mxu0 0.0
    %231 = vmatmul.mubr.f32.gmra.mrb[0].mxu0 %v63
    %v232 = vpop.f32.mrb[0].mxu0
    %v233 = vadd.f32 0.0, %v232
    %v234 = vpop.f32.mrb[0].mxu0
    %235 = vmatprep.mubr.f32.mxu0 0.0
    %236 = vmatmul.mubr.f32.gmra.mrb[0].mxu0 %v64
    %v237 = vpop.f32.mrb[0].mxu0
    %v238 = vadd.f32 0.0, %v237
    %v239 = vpop.f32.mrb[0].mxu0
    %240 = vdwg.mxu0
    %v241 = vsub.f32 %v46, %v148
    %v242 = vsub.f32 %v47, %v153
    %v243 = vsub.f32 %v48, %v158
    %v244 = vsub.f32 %v49, %v163
    %v245 = vsub.f32 %v50, %v168
    %v246 = vsub.f32 %v51, %v173
    %v247 = vsub.f32 %v52, %v178
    %v248 = vsub.f32 %v53, %v183
    %v249 = vsub.f32 %v54, %v188
    %v250 = vsub.f32 %v55, %v193
    %v251 = vsub.f32 %v56, %v198
    %v252 = vsub.f32 %v57, %v203
    %v253 = vsub.f32 %v58, %v208
    %v254 = vsub.f32 %v59, %v213
    %v255 = vsub.f32 %v60, %v218
    %v256 = vsub.f32 %v61, %v223
    %v257 = vsub.f32 %v62, %v228
    %v258 = vsub.f32 %v63, %v233
    %v259 = vsub.f32 %v64, %v238
    %v260 = vmul.f32 %v241, %v241
    %v261 = vmul.f32 %v242, %v242
    %v262 = vmul.f32 %v243, %v243
    %v263 = vmul.f32 %v244, %v244
    %v264 = vmul.f32 %v245, %v245
    %v265 = vmul.f32 %v246, %v246
    %v266 = vmul.f32 %v247, %v247
    %v267 = vmul.f32 %v248, %v248
    %v268 = vmul.f32 %v249, %v249
    %v269 = vmul.f32 %v250, %v250
    %v270 = vmul.f32 %v251, %v251
    %v271 = vmul.f32 %v252, %v252
    %v272 = vmul.f32 %v253, %v253
    %v273 = vmul.f32 %v254, %v254
    %v274 = vmul.f32 %v255, %v255
    %v275 = vmul.f32 %v256, %v256
    %v276 = vmul.f32 %v257, %v257
    %v277 = vmul.f32 %v258, %v258
    %v278 = vmul.f32 %v259, %v259
    %279 = vmatprep.subr.mxu0 0.0
    %280 = vmatpush1.msra.mxu0 %v65
    %281 = vmatprep.subr.mxu0 0.0
    %282 = vmatpush1.msra.mxu0 %v66
    %283 = vmatprep.subr.mxu0 0.0
    %284 = vmatpush1.msra.mxu0 %v67
    %285 = vmatprep.subr.mxu0 0.0
    %286 = vmatpush1.msra.mxu0 %v68
    %287 = vmatprep.subr.mxu0 0.0
    %288 = vmatpush1.msra.mxu0 %v69
    %289 = vmatprep.subr.mxu0 0.0
    %290 = vmatpush1.msra.mxu0 %v70
    %291 = vmatprep.subr.mxu0 0.0
    %292 = vmatpush1.msra.mxu0 %v71
    %293 = vmatprep.subr.mxu0 0.0
    %294 = vmatpush1.msra.mxu0 %v72
    %295 = vmatprep.subr.mxu0 0.0
    %296 = vmatpush1.msra.mxu0 %v73
    %297 = vmatprep.subr.mxu0 0.0
    %298 = vmatpush1.msra.mxu0 %v74
    %299 = vmatprep.subr.mxu0 0.0
    %300 = vmatpush1.msra.mxu0 %v75
    %301 = vmatprep.subr.mxu0 0.0
    %302 = vmatpush1.msra.mxu0 %v76
    %303 = vmatprep.subr.mxu0 0.0
    %304 = vmatpush1.msra.mxu0 %v77
    %305 = vmatprep.subr.mxu0 0.0
    %306 = vmatpush1.msra.mxu0 %v78
    %307 = vmatprep.subr.mxu0 0.0
    %308 = vmatpush1.msra.mxu0 %v79
    %309 = vmatprep.subr.mxu0 0.0
    %310 = vmatpush1.msra.mxu0 %v80
    %311 = vmatprep.subr.mxu0 0.0
    %312 = vmatpush1.msra.mxu0 0.0
    %313 = vmatprep.subr.mxu0 0.0
    %314 = vmatpush1.msra.mxu0 0.0
    %315 = vmatprep.subr.mxu0 0.0
    %316 = vmatpush1.msra.mxu0 0.0
    %317 = vmatprep.subr.mxu0 0.0
    %318 = vmatpush1.msra.mxu0 0.0
    %319 = vmatprep.subr.mxu0 0.0
    %320 = vmatpush1.msra.mxu0 0.0
    %321 = vmatprep.subr.mxu0 0.0
    %322 = vmatpush1.msra.mxu0 0.0
    %323 = vmatprep.subr.mxu0 0.0
    %324 = vmatpush1.msra.mxu0 0.0
    %325 = vmatprep.subr.mxu0 0.0
    %326 = vmatpush1.msra.mxu0 0.0
    %327 = vmatprep.subr.mxu0 0.0
    %328 = vmatpush1.msra.mxu0 0.0
    %329 = vmatprep.subr.mxu0 0.0
    %330 = vmatpush1.msra.mxu0 0.0
    %331 = vmatprep.subr.mxu0 0.0
    %332 = vmatpush1.msra.mxu0 0.0
    %333 = vmatprep.subr.mxu0 0.0
    %334 = vmatpush1.msra.mxu0 0.0
    %335 = vmatprep.subr.mxu0 0.0
    %336 = vmatpush1.msra.mxu0 0.0
    %337 = vmatprep.subr.mxu0 0.0
    %338 = vmatpush1.msra.mxu0 0.0
    %339 = vmatprep.subr.mxu0 0.0
    %340 = vmatpush1.msra.mxu0 0.0
    %341 = vmatprep.subr.mxu0 0.0
    %342 = vmatpush1.msra.mxu0 0.0
    %343 = vmatprep.mubr.f32.mxu0 0.0
    %344 = vmatmul.mubr.f32.gmra.mrb[0].mxu0 %v260
    %v345 = vpop.f32.mrb[0].mxu0
    %v346 = vadd.f32 1e-05, %v345
    %v347 = vpop.f32.mrb[0].mxu0
    %348 = vmatprep.mubr.f32.mxu0 0.0
    %349 = vmatmul.mubr.f32.gmra.mrb[0].mxu0 %v261
    %v350 = vpop.f32.mrb[0].mxu0
    %v351 = vadd.f32 1e-05, %v350
    %v352 = vpop.f32.mrb[0].mxu0
    %353 = vmatprep.mubr.f32.mxu0 0.0
    %354 = vmatmul.mubr.f32.gmra.mrb[0].mxu0 %v262
    %v355 = vpop.f32.mrb[0].mxu0
    %v356 = vadd.f32 1e-05, %v355
    %v357 = vpop.f32.mrb[0].mxu0
    %358 = vmatprep.mubr.f32.mxu0 0.0
    %359 = vmatmul.mubr.f32.gmra.mrb[0].mxu0 %v263
    %v360 = vpop.f32.mrb[0].mxu0
    %v361 = vadd.f32 1e-05, %v360
    %v362 = vpop.f32.mrb[0].mxu0
    %363 = vmatprep.mubr.f32.mxu0 0.0
    %364 = vmatmul.mubr.f32.gmra.mrb[0].mxu0 %v264
    %v365 = vpop.f32.mrb[0].mxu0
    %v366 = vadd.f32 1e-05, %v365
    %v367 = vpop.f32.mrb[0].mxu0
    %368 = vmatprep.mubr.f32.mxu0 0.0
    %369 = vmatmul.mubr.f32.gmra.mrb[0].mxu0 %v265
    %v370 = vpop.f32.mrb[0].mxu0
    %v371 = vadd.f32 1e-05, %v370
    %v372 = vpop.f32.mrb[0].mxu0
    %373 = vmatprep.mubr.f32.mxu0 0.0
    %374 = vmatmul.mubr.f32.gmra.mrb[0].mxu0 %v266
    %v375 = vpop.f32.mrb[0].mxu0
    %v376 = vadd.f32 1e-05, %v375
    %v377 = vpop.f32.mrb[0].mxu0
    %378 = vmatprep.mubr.f32.mxu0 0.0
    %379 = vmatmul.mubr.f32.gmra.mrb[0].mxu0 %v267
    %v380 = vpop.f32.mrb[0].mxu0
    %v381 = vadd.f32 1e-05, %v380
    %v382 = vpop.f32.mrb[0].mxu0
    %383 = vmatprep.mubr.f32.mxu0 0.0
    %384 = vmatmul.mubr.f32.gmra.mrb[0].mxu0 %v268
    %v385 = vpop.f32.mrb[0].mxu0
    %v386 = vadd.f32 1e-05, %v385
    %v387 = vpop.f32.mrb[0].mxu0
    %388 = vmatprep.mubr.f32.mxu0 0.0
    %389 = vmatmul.mubr.f32.gmra.mrb[0].mxu0 %v269
    %v390 = vpop.f32.mrb[0].mxu0
    %v391 = vadd.f32 1e-05, %v390
    %v392 = vpop.f32.mrb[0].mxu0
    %393 = vmatprep.mubr.f32.mxu0 0.0
    %394 = vmatmul.mubr.f32.gmra.mrb[0].mxu0 %v270
    %v395 = vpop.f32.mrb[0].mxu0
    %v396 = vadd.f32 1e-05, %v395
    %v397 = vpop.f32.mrb[0].mxu0
    %398 = vmatprep.mubr.f32.mxu0 0.0
    %399 = vmatmul.mubr.f32.gmra.mrb[0].mxu0 %v271
    %v400 = vpop.f32.mrb[0].mxu0
    %v401 = vadd.f32 1e-05, %v400
    %v402 = vpop.f32.mrb[0].mxu0
    %403 = vmatprep.mubr.f32.mxu0 0.0
    %404 = vmatmul.mubr.f32.gmra.mrb[0].mxu0 %v272
    %v405 = vpop.f32.mrb[0].mxu0
    %v406 = vadd.f32 1e-05, %v405
    %v407 = vpop.f32.mrb[0].mxu0
    %408 = vmatprep.mubr.f32.mxu0 0.0
    %409 = vmatmul.mubr.f32.gmra.mrb[0].mxu0 %v273
    %v410 = vpop.f32.mrb[0].mxu0
    %v411 = vadd.f32 1e-05, %v410
    %v412 = vpop.f32.mrb[0].mxu0
    %413 = vmatprep.mubr.f32.mxu0 0.0
    %414 = vmatmul.mubr.f32.gmra.mrb[0].mxu0 %v274
    %v415 = vpop.f32.mrb[0].mxu0
    %v416 = vadd.f32 1e-05, %v415
    %v417 = vpop.f32.mrb[0].mxu0
    %418 = vmatprep.mubr.f32.mxu0 0.0
    %419 = vmatmul.mubr.f32.gmra.mrb[0].mxu0 %v275
    %v420 = vpop.f32.mrb[0].mxu0
    %v421 = vadd.f32 1e-05, %v420
    %v422 = vpop.f32.mrb[0].mxu0
    %423 = vmatprep.mubr.f32.mxu0 0.0
    %424 = vmatmul.mubr.f32.gmra.mrb[0].mxu0 %v276
    %v425 = vpop.f32.mrb[0].mxu0
    %v426 = vadd.f32 1e-05, %v425
    %v427 = vpop.f32.mrb[0].mxu0
    %428 = vmatprep.mubr.f32.mxu0 0.0
    %429 = vmatmul.mubr.f32.gmra.mrb[0].mxu0 %v277
    %v430 = vpop.f32.mrb[0].mxu0
    %v431 = vadd.f32 1e-05, %v430
    %v432 = vpop.f32.mrb[0].mxu0
    %433 = vmatprep.mubr.f32.mxu0 0.0
    %434 = vmatmul.mubr.f32.gmra.mrb[0].mxu0 %v278
    %v435 = vpop.f32.mrb[0].mxu0
    %v436 = vadd.f32 1e-05, %v435
    %v437 = vpop.f32.mrb[0].mxu0
    %438 = vdwg.mxu0
    %v439 = vrsqrt.pop %v346
    %v440 = vrsqrt.pop %v351
    %v441 = vrsqrt.pop %v356
    %v442 = vrsqrt.pop %v361
    %v443 = vrsqrt.pop %v366
    %v444 = vrsqrt.pop %v371
    %v445 = vrsqrt.pop %v376
    %v446 = vrsqrt.pop %v381
    %v447 = vrsqrt.pop %v386
    %v448 = vrsqrt.pop %v391
    %v449 = vrsqrt.pop %v396
    %v450 = vrsqrt.pop %v401
    %v451 = vrsqrt.pop %v406
    %v452 = vrsqrt.pop %v411
    %v453 = vrsqrt.pop %v416
    %v454 = vrsqrt.pop %v421
    %v455 = vrsqrt.pop %v426
    %v456 = vrsqrt.pop %v431
    %v457 = vrsqrt.pop %v436
    %v458 = vmul.f32 %v241, %v439
    %v459 = vmul.f32 %v242, %v440
    %v460 = vmul.f32 %v243, %v441
    %v461 = vmul.f32 %v244, %v442
    %v462 = vmul.f32 %v245, %v443
    %v463 = vmul.f32 %v246, %v444
    %v464 = vmul.f32 %v247, %v445
    %v465 = vmul.f32 %v248, %v446
    %v466 = vmul.f32 %v249, %v447
    %v467 = vmul.f32 %v250, %v448
    %v468 = vmul.f32 %v251, %v449
    %v469 = vmul.f32 %v252, %v450
    %v470 = vmul.f32 %v253, %v451
    %v471 = vmul.f32 %v254, %v452
    %v472 = vmul.f32 %v255, %v453
    %v473 = vmul.f32 %v256, %v454
    %v474 = vmul.f32 %v257, %v455
    %v475 = vmul.f32 %v258, %v456
    %v476 = vmul.f32 %v259, %v457
    %v477 = vld [vmem:[%s1] sm:$0x1]
    %v479 = vlaneseq
    %v480 = vshrl.u32 %v479, 7
    %v481 = vsub.s32 0, %v480
    %v482 = vrot.slane %v477, %v481
    %v484 = vmul.f32 %v458, %v482
    %v485 = vmul.f32 %v459, %v482
    %v486 = vmul.f32 %v460, %v482
    %v487 = vmul.f32 %v461, %v482
    %v488 = vmul.f32 %v462, %v482
    %v489 = vmul.f32 %v463, %v482
    %v490 = vmul.f32 %v464, %v482
    %v491 = vmul.f32 %v465, %v482
    %v492 = vmul.f32 %v466, %v482
    %v493 = vmul.f32 %v467, %v482
    %v494 = vmul.f32 %v468, %v482
    %v495 = vmul.f32 %v469, %v482
    %v496 = vmul.f32 %v470, %v482
    %v497 = vmul.f32 %v471, %v482
    %v498 = vmul.f32 %v472, %v482
    %v499 = vmul.f32 %v473, %v482
    %v500 = vmul.f32 %v474, %v482
    %v501 = vmul.f32 %v475, %v482
    %v502 = vmul.f32 %v476, %v482
    %v503 = vld [vmem:[%s2] sm:$0x1]
    %v505 = vlaneseq
    %v506 = vshrl.u32 %v505, 7
    %v507 = vsub.s32 0, %v506
    %v508 = vrot.slane %v503, %v507
    %v510 = vadd.f32 %v484, %v508
    %v511 = vadd.f32 %v485, %v508
    %v512 = vadd.f32 %v486, %v508
    %v513 = vadd.f32 %v487, %v508
    %v514 = vadd.f32 %v488, %v508
    %v515 = vadd.f32 %v489, %v508
    %v516 = vadd.f32 %v490, %v508
    %v517 = vadd.f32 %v491, %v508
    %v518 = vadd.f32 %v492, %v508
    %v519 = vadd.f32 %v493, %v508
    %v520 = vadd.f32 %v494, %v508
    %v521 = vadd.f32 %v495, %v508
    %v522 = vadd.f32 %v496, %v508
    %v523 = vadd.f32 %v497, %v508
    %v524 = vadd.f32 %v498, %v508
    %v525 = vadd.f32 %v499, %v508
    %v526 = vadd.f32 %v500, %v508
    %v527 = vadd.f32 %v501, %v508
    %v528 = vadd.f32 %v502, %v508
    %529 = vst [vmem:[#allocation7] sm:$0xff] %v510
    %530 = vst [vmem:[#allocation7 + $0x8] sm:$0xff] %v511
    %531 = vst [vmem:[#allocation7 + $0x10] sm:$0xff] %v512
    %532 = vst [vmem:[#allocation7 + $0x18] sm:$0xff] %v513
    %533 = vst [vmem:[#allocation7 + $0x20] sm:$0xff] %v514
    %534 = vst [vmem:[#allocation7 + $0x28] sm:$0xff] %v515
    %535 = vst [vmem:[#allocation7 + $0x30] sm:$0xff] %v516
    %536 = vst [vmem:[#allocation7 + $0x38] sm:$0xff] %v517
    %537 = vst [vmem:[#allocation7 + $0x40] sm:$0xff] %v518
    %538 = vst [vmem:[#allocation7 + $0x48] sm:$0xff] %v519
    %539 = vst [vmem:[#allocation7 + $0x50] sm:$0xff] %v520
    %540 = vst [vmem:[#allocation7 + $0x58] sm:$0xff] %v521
    %541 = vst [vmem:[#allocation7 + $0x60] sm:$0xff] %v522
    %542 = vst [vmem:[#allocation7 + $0x68] sm:$0xff] %v523
    %543 = vst [vmem:[#allocation7 + $0x70] sm:$0xff] %v524
    %544 = vst [vmem:[#allocation7 + $0x78] sm:$0xff] %v525
    %545 = vst [vmem:[#allocation7 + $0x80] sm:$0xff] %v526
    %546 = vst [vmem:[#allocation7 + $0x88] sm:$0xff] %v527
    %547 = vst [vmem:[#allocation7 + $0x90] sm:$0xff] %v528
    // Predicated region
    $region26: #{tpu_custom_call.1} parent=1 // pred_check
      _
    $region27: #{tpu_custom_call.1} parent=1 // pred_check_branch
      %549 = sbr.rel (0) target = $region29
    $region28: #{tpu_custom_call.1} parent=1 // pred_region
      %s551 = ssub.s32 2432, 2432
      %552 = vsyncadd [#allocation4], %s551
      %s553 = sshll.u32 [#allocation7], 4
      %s554 = int_to_ptr.vmem [resolvable:$true] %s553
      %559 = dma.vmem_to_hbm [thread:$0]  %s554, 2432, %s4, [#allocation4], 128, 128, 8
    $region29: #{tpu_custom_call.1} parent=1 // pred_fallthru
      _
    // Predicated region
    $region30: #{tpu_custom_call.1} parent=1 // pred_check
      _
    $region31: #{tpu_custom_call.1} parent=1 // pred_check_branch
      %561 = sbr.rel (0) target = $region33
    $region32: #{tpu_custom_call.1} parent=1 // pred_region
      %562 = dma.done [#allocation4], 2432
    $region33: #{tpu_custom_call.1} parent=1 // pred_fallthru
      _
    %563 = vsyncpa [#allocation3], 1
    %564 = vsyncpa [#allocation6], 1
    %565 = vsyncpa [#allocation4], 1

</llo_original>
